<compile_context>
chip_gen: v5e
topology: v5e:2x2
jax: 0.10.0
libtpu: 0.0.40
codegen_flags: <defaults>
</compile_context>

<pallas_src>
import functools

import jax
import jax.numpy as jnp
import numpy as np
from jax.experimental import pallas as pl
from jax.experimental.pallas import tpu as pltpu


def _round_up(x, m):
    return ((x + m - 1) // m) * m


_PAD_MODE = {"reflect": "reflect", "zeros": "constant",
             "replicate": "edge", "circular": "wrap"}


# ------------------------------ Pallas kernel ------------------------------ #

def conv_block_kernel(x_ref, w_ref, b_ref, o_ref, *,
                      nf, OH, OW, Cin, normal, activation, eps):
    # x_ref: (1, Hp, Wp, Cin)        bf16 padded input for one batch element
    # w_ref: (nf*nf*Cin, Cout_p)     bf16 im2col-ordered weights
    # b_ref: (1, Cout_p)             f32 bias (unused under instance norm)
    # o_ref: (1, OH*OW, Cout_p)      bf16 output
    x = x_ref[0]                                            # (Hp, Wp, Cin) bf16
    S = OH * OW
    K = nf * nf * Cin

    # Fused im2col, built ONCE: 9 shifted views concatenated along the lane
    # (channel) axis -> (OH, OW, nf*nf*Cin), then a leading-dim merge (last
    # dim preserved, cheap) -> (S, K).  One MXU matmul does all accumulation.
    taps = [x[kh:kh + OH, kw:kw + OW, :]
            for kh in range(nf) for kw in range(nf)]        # each (OH, OW, Cin)
    patch = jnp.concatenate(taps, axis=-1).reshape(S, K)    # (S, K) bf16

    y = jnp.dot(patch, w_ref[...],
                preferred_element_type=jnp.float32)         # (S, Cout_p) f32

    if normal == "instance":
        # Bias is mathematically cancelled by the mean subtraction: skip it.
        # Single-pass statistics over spatial (axis 0), per channel, biased
        # variance, eps matching nn.InstanceNorm2d.
        inv_n = 1.0 / float(S)
        mean = jnp.sum(y, axis=0, keepdims=True) * inv_n            # (1, C)
        mean_sq = jnp.sum(y * y, axis=0, keepdims=True) * inv_n     # (1, C)
        var = jnp.maximum(mean_sq - mean * mean, 0.0)
        y = (y - mean) * jax.lax.rsqrt(var + eps)
    else:
        y = y + b_ref[...]

    if activation == "relu":
        y = jnp.maximum(y, 0.0)
    elif activation == "lrelu":
        y = jnp.where(y > 0, y, 0.2 * y)
    elif activation == "sigmoid":
        y = jax.nn.sigmoid(y)
    elif activation == "tanh":
        y = jnp.tanh(y)

    o_ref[0] = y.astype(o_ref.dtype)


# ------------------------------ Pallas wrapper ------------------------------ #

@functools.partial(
    jax.jit,
    static_argnames=("stride", "padding", "padding_mode", "normal", "activation"))
def conv_block_pallas(x_nchw, w, b, *, stride=1, padding=True,
                      padding_mode="reflect", normal="instance",
                      activation="relu"):
    """Forward pass of ConvBlock.  x_nchw: (B, Cin, H, W); w: (Cout, Cin, nf, nf)."""
    if stride != 1:
        raise NotImplementedError("Pallas path implements stride=1 (module default).")
    if normal == "batch":
        raise NotImplementedError("BatchNorm2d not implemented in the Pallas path.")

    Cout, Cin, nf, nf2 = w.shape
    assert nf == nf2

    # NCHW -> NHWC; cast to bf16 BEFORE padding so the pad pass runs on half
    # the bytes (XLA fuses transpose+convert).
    x = jnp.transpose(x_nchw, (0, 2, 3, 1)).astype(jnp.bfloat16)
    B, H, W, _ = x.shape
    if padding:
        pad = (nf - 1) // 2
        x = jnp.pad(x, ((0, 0), (pad, pad), (pad, pad), (0, 0)),
                    mode=_PAD_MODE[padding_mode])
    Hp, Wp = x.shape[1], x.shape[2]
    OH, OW = Hp - nf + 1, Wp - nf + 1
    S = OH * OW
    K = nf * nf * Cin

    # Lane-dense output channels (unmasked vst); sliced off after the call.
    Cout_p = _round_up(Cout, 128)
    # Weights (Cout, Cin, kh, kw) -> (kh, kw, Cin, Cout) -> (K, Cout_p),
    # matching the patch lane order t*Cin + c with t = kh*nf + kw.
    w_t = jnp.transpose(w, (2, 3, 1, 0)).reshape(K, Cout)
    if Cout_p != Cout:
        w_t = jnp.pad(w_t, ((0, 0), (0, Cout_p - Cout)))
        b_p = jnp.pad(b, (0, Cout_p - Cout))
    else:
        b_p = b

    w_bf = w_t.astype(jnp.bfloat16)
    b_f = b_p.astype(jnp.float32).reshape(1, Cout_p)

    kernel = functools.partial(
        conv_block_kernel, nf=nf, OH=OH, OW=OW, Cin=Cin,
        normal=normal, activation=activation, eps=1e-5)

    flops = 2 * B * S * K * Cout_p
    if activation in ("sigmoid", "tanh"):
        transcendentals = B * S * Cout_p
    elif normal == "instance":
        transcendentals = B * Cout_p
    else:
        transcendentals = 0
    bytes_accessed = (x.size * 2            # bf16 activations in
                      + w_bf.size * 2       # bf16 weights
                      + b_f.size * 4        # f32 bias
                      + B * S * Cout_p * 2)  # bf16 output

    out = pl.pallas_call(
        kernel,
        out_shape=jax.ShapeDtypeStruct((B, S, Cout_p), jnp.bfloat16),
        grid=(B,),
        in_specs=[
            pl.BlockSpec((1, Hp, Wp, Cin), lambda bi: (bi, 0, 0, 0)),
            pl.BlockSpec((K, Cout_p), lambda bi: (0, 0)),
            pl.BlockSpec((1, Cout_p), lambda bi: (0, 0)),
        ],
        out_specs=pl.BlockSpec((1, S, Cout_p), lambda bi: (bi, 0, 0)),
        compiler_params=pltpu.CompilerParams(
            dimension_semantics=("parallel",)),
        cost_estimate=pl.CostEstimate(flops=int(flops),
                                      transcendentals=int(transcendentals),
                                      bytes_accessed=int(bytes_accessed)),
    )(x, w_bf, b_f)

    out = out[:, :, :Cout].reshape(B, OH, OW, Cout)
    # NHWC -> NCHW; cast back to f32 to match the PyTorch module contract
    # (fused with the transpose by XLA).
    return jnp.transpose(out, (0, 3, 1, 2)).astype(jnp.float32)


# --------------------------- pure-JAX reference ----------------------------- #

@functools.partial(
    jax.jit,
    static_argnames=("stride", "padding", "padding_mode", "normal", "activation"))
def conv_block_ref(x, w, b, *, stride=1, padding=True, padding_mode="reflect",
                   normal="instance", activation="relu"):
    nf = w.shape[-1]
    if padding:
        pad = (nf - 1) // 2
        x = jnp.pad(x, ((0, 0), (0, 0), (pad, pad), (pad, pad)),
                    mode=_PAD_MODE[padding_mode])
    y = jax.lax.conv_general_dilated(
        x, w, (stride, stride), "VALID",
        dimension_numbers=("NCHW", "OIHW", "NCHW"))
    y = y + b[None, :, None, None]
    if normal == "instance":
        mean = jnp.mean(y, axis=(2, 3), keepdims=True)
        var = jnp.mean((y - mean) ** 2, axis=(2, 3), keepdims=True)
        y = (y - mean) * jax.lax.rsqrt(var + 1e-5)
    if activation == "relu":
        y = jnp.maximum(y, 0.0)
    elif activation == "lrelu":
        y = jnp.where(y > 0, y, 0.2 * y)
    elif activation == "sigmoid":
        y = jax.nn.sigmoid(y)
    elif activation == "tanh":
        y = jnp.tanh(y)
    return y


# ----------------------------------- main ----------------------------------- #

if __name__ == "__main__":
    key = jax.random.PRNGKey(0)
    kx, kw, kb = jax.random.split(key, 3)

    B, Cin, H, W = 2, 4, 16, 16
    Cout, nf = 64, 3

    x = jax.random.normal(kx, (B, Cin, H, W), jnp.float32)
    w = jax.random.normal(kw, (Cout, Cin, nf, nf), jnp.float32) / np.sqrt(Cin * nf * nf)
    b = jax.random.normal(kb, (Cout,), jnp.float32) * 0.1

    # Default ConvBlock: reflect pad, InstanceNorm, ReLU, stride 1.
    out1 = jax.block_until_ready(conv_block_pallas(x, w, b))
    ref1 = jax.block_until_ready(conv_block_ref(x, w, b))
    np.testing.assert_allclose(np.asarray(out1), np.asarray(ref1),
                               rtol=3e-2, atol=3e-2)
    assert out1.shape == (B, Cout, H, W)

    # Variant: zero padding, no norm, LeakyReLU(0.2).
    out2 = jax.block_until_ready(conv_block_pallas(
        x, w, b, padding_mode="zeros", normal=None, activation="lrelu"))
    ref2 = jax.block_until_ready(conv_block_ref(
        x, w, b, padding_mode="zeros", normal=None, activation="lrelu"))
    np.testing.assert_allclose(np.asarray(out2), np.asarray(ref2),
                               rtol=3e-2, atol=3e-2)
    assert out2.shape == (B, Cout, H, W)

    print("KERNEL_OK")
</pallas_src>

<mosaic_0001>
module attributes {stable_mosaic.version = 11 : i64} {
  func.func @conv_block_kernel(%arg0: i32, %arg1: memref<1x18x18x4xbf16, #tpu.memory_space<vmem>>, %arg2: memref<36x128xbf16, #tpu.memory_space<vmem>>, %arg3: memref<1x128xf32, #tpu.memory_space<vmem>>, %arg4: memref<1x256x128xbf16, #tpu.memory_space<vmem>>) attributes {dimension_semantics = [#tpu.dimension_semantics<parallel>], iteration_bounds = array<i64: 2>, scalar_prefetch = 0 : i64, scratch_operands = 0 : i64, tpu.core_type = #tpu.core_type<tc>, window_params = [{transform_indices = @transform_0, window_bounds = array<i64: 1, 18, 18, 4>}, {pipeline_mode = #tpu.pipeline_mode<synchronous>, transform_indices = @transform_1, window_bounds = array<i64: 36, 128>}, {pipeline_mode = #tpu.pipeline_mode<synchronous>, transform_indices = @transform_2, window_bounds = array<i64: 1, 128>}, {transform_indices = @transform_3, window_bounds = array<i64: 1, 256, 128>}]} {
    %c0 = arith.constant 0 : index
    %c0_0 = arith.constant 0 : index
    %c0_1 = arith.constant 0 : index
    %c0_2 = arith.constant 0 : index
    %0 = vector.load %arg1[%c0, %c0_0, %c0_1, %c0_2] : memref<1x18x18x4xbf16, #tpu.memory_space<vmem>>, vector<1x18x18x4xbf16>
    %1 = vector.shape_cast %0 : vector<1x18x18x4xbf16> to vector<18x18x4xbf16>
    %2 = vector.extract_strided_slice %1 {offsets = [0, 0, 0], sizes = [16, 16, 4], strides = [1, 1, 1]} : vector<18x18x4xbf16> to vector<16x16x4xbf16>
    %3 = vector.extract_strided_slice %1 {offsets = [0, 1, 0], sizes = [16, 16, 4], strides = [1, 1, 1]} : vector<18x18x4xbf16> to vector<16x16x4xbf16>
    %4 = vector.extract_strided_slice %1 {offsets = [0, 2, 0], sizes = [16, 16, 4], strides = [1, 1, 1]} : vector<18x18x4xbf16> to vector<16x16x4xbf16>
    %5 = vector.extract_strided_slice %1 {offsets = [1, 0, 0], sizes = [16, 16, 4], strides = [1, 1, 1]} : vector<18x18x4xbf16> to vector<16x16x4xbf16>
    %6 = vector.extract_strided_slice %1 {offsets = [1, 1, 0], sizes = [16, 16, 4], strides = [1, 1, 1]} : vector<18x18x4xbf16> to vector<16x16x4xbf16>
    %7 = vector.extract_strided_slice %1 {offsets = [1, 2, 0], sizes = [16, 16, 4], strides = [1, 1, 1]} : vector<18x18x4xbf16> to vector<16x16x4xbf16>
    %8 = vector.extract_strided_slice %1 {offsets = [2, 0, 0], sizes = [16, 16, 4], strides = [1, 1, 1]} : vector<18x18x4xbf16> to vector<16x16x4xbf16>
    %9 = vector.extract_strided_slice %1 {offsets = [2, 1, 0], sizes = [16, 16, 4], strides = [1, 1, 1]} : vector<18x18x4xbf16> to vector<16x16x4xbf16>
    %10 = vector.extract_strided_slice %1 {offsets = [2, 2, 0], sizes = [16, 16, 4], strides = [1, 1, 1]} : vector<18x18x4xbf16> to vector<16x16x4xbf16>
    %11 = tpu.concatenate %2, %3, %4, %5, %6, %7, %8, %9, %10 in 2 : vector<16x16x4xbf16>, vector<16x16x4xbf16>, vector<16x16x4xbf16>, vector<16x16x4xbf16>, vector<16x16x4xbf16>, vector<16x16x4xbf16>, vector<16x16x4xbf16>, vector<16x16x4xbf16>, vector<16x16x4xbf16> -> vector<16x16x36xbf16>
    %12 = vector.shape_cast %11 : vector<16x16x36xbf16> to vector<256x36xbf16>
    %c0_3 = arith.constant 0 : index
    %c0_4 = arith.constant 0 : index
    %13 = vector.load %arg2[%c0_3, %c0_4] : memref<36x128xbf16, #tpu.memory_space<vmem>>, vector<36x128xbf16>
    %cst = arith.constant dense<0.000000e+00> : vector<256x128xf32>
    %14 = tpu.matmul %12, %13, %cst {dimension_numbers = #tpu.dot_dimension_numbers<[1], [0], [0], [1], [0, 0, 1, 1], [], []>} : vector<256x36xbf16>, vector<36x128xbf16>, vector<256x128xf32> -> vector<256x128xf32>
    %cst_5 = arith.constant dense<0.000000e+00> : vector<128xf32>
    %15 = vector.multi_reduction <add>, %14, %cst_5 [0] : vector<256x128xf32> to vector<128xf32>
    %16 = vector.shape_cast %15 : vector<128xf32> to vector<1x128xf32>
    %cst_6 = arith.constant 3.906250e-03 : f32
    %17 = vector.broadcast %cst_6 : f32 to vector<1x128xf32>
    %18 = arith.mulf %16, %17 : vector<1x128xf32>
    %19 = arith.mulf %14, %14 : vector<256x128xf32>
    %cst_7 = arith.constant dense<0.000000e+00> : vector<128xf32>
    %20 = vector.multi_reduction <add>, %19, %cst_7 [0] : vector<256x128xf32> to vector<128xf32>
    %21 = vector.shape_cast %20 : vector<128xf32> to vector<1x128xf32>
    %cst_8 = arith.constant 3.906250e-03 : f32
    %22 = vector.broadcast %cst_8 : f32 to vector<1x128xf32>
    %23 = arith.mulf %21, %22 : vector<1x128xf32>
    %24 = arith.mulf %18, %18 : vector<1x128xf32>
    %25 = arith.subf %23, %24 : vector<1x128xf32>
    %cst_9 = arith.constant 0.000000e+00 : f32
    %26 = vector.broadcast %cst_9 : f32 to vector<1x128xf32>
    %27 = arith.maximumf %25, %26 : vector<1x128xf32>
    %28 = vector.broadcast %18 : vector<1x128xf32> to vector<256x128xf32>
    %29 = arith.subf %14, %28 : vector<256x128xf32>
    %cst_10 = arith.constant 9.99999974E-6 : f32
    %30 = vector.broadcast %cst_10 : f32 to vector<1x128xf32>
    %31 = arith.addf %27, %30 : vector<1x128xf32>
    %32 = math.rsqrt %31 : vector<1x128xf32>
    %33 = vector.broadcast %32 : vector<1x128xf32> to vector<256x128xf32>
    %34 = arith.mulf %29, %33 : vector<256x128xf32>
    %cst_11 = arith.constant 0.000000e+00 : f32
    %35 = vector.broadcast %cst_11 : f32 to vector<256x128xf32>
    %36 = arith.maximumf %34, %35 : vector<256x128xf32>
    %37 = arith.truncf %36 : vector<256x128xf32> to vector<256x128xbf16>
    %c0_12 = arith.constant 0 : index
    %c0_13 = arith.constant 0 : index
    %c0_14 = arith.constant 0 : index
    %38 = vector.load %arg4[%c0_12, %c0_13, %c0_14] : memref<1x256x128xbf16, #tpu.memory_space<vmem>>, vector<1x256x128xbf16>
    %39 = vector.shape_cast %38 : vector<1x256x128xbf16> to vector<256x128xbf16>
    %40 = vector.shape_cast %37 : vector<256x128xbf16> to vector<1x256x128xbf16>
    tpu.vector_store %arg4[%c0_12, %c0_13, %c0_14], %40 {strides = array<i32>} : memref<1x256x128xbf16, #tpu.memory_space<vmem>>, vector<1x256x128xbf16>,
    return
  }
  func.func @transform_0(%arg0: i32) -> (i32, i32, i32, i32) {
    %c0_i32 = arith.constant 0 : i32
    %c0_i32_0 = arith.constant 0 : i32
    %c0_i32_1 = arith.constant 0 : i32
    %c0_i32_2 = arith.constant 0 : i32
    return %arg0, %c0_i32, %c0_i32_0, %c0_i32_1 : i32, i32, i32, i32
  }
  func.func @transform_1(%arg0: i32) -> (i32, i32) {
    %c0_i32 = arith.constant 0 : i32
    %c0_i32_0 = arith.constant 0 : i32
    %c0_i32_1 = arith.constant 0 : i32
    return %c0_i32, %c0_i32_0 : i32, i32
  }
  func.func @transform_2(%arg0: i32) -> (i32, i32) {
    %c0_i32 = arith.constant 0 : i32
    %c0_i32_0 = arith.constant 0 : i32
    %c0_i32_1 = arith.constant 0 : i32
    return %c0_i32, %c0_i32_0 : i32, i32
  }
  func.func @transform_3(%arg0: i32) -> (i32, i32, i32) {
    %c0_i32 = arith.constant 0 : i32
    %c0_i32_0 = arith.constant 0 : i32
    %c0_i32_1 = arith.constant 0 : i32
    return %arg0, %c0_i32, %c0_i32_0 : i32, i32, i32
  }
}

</mosaic_0001>

<llo_original>
// kernel: conv_block_pallas.1
$region0: #{conv_block_pallas.1}
  #allocation0 [shape = 'u32[]', space=smem, size = 0x4, offset = 0x4, fixed_abs, tag = 'smem constant byte address 0x4 - core index']
  #allocation1 [shape = 'u32[72,128]{1,0:T(1,128)}', space=vmem, size = 0x9000, scoped, tag = 'internal scratch']
  %s0 = inlined_call_operand.vmem [shape: bf16[2,18,18,4], index: 0, kind: input, shape index: {}]
  %s1 = inlined_call_operand.vmem [shape: bf16[36,128], index: 1, kind: input, shape index: {}]
  %s2 = inlined_call_operand.vmem [shape: f32[1,128], index: 2, kind: input, shape index: {}]
  %s3 = inlined_call_operand.vmem [shape: bf16[2,256,128], index: 3, kind: output, shape index: {}]
  %s4 = sld [smem:[#allocation0]]
  $region45: #{conv_block_pallas.1} parent=0
    _
  %s6 = ssub.s32 1, %s4
  %s7 = scalar_select 0, %s6, %s4
  loop: start=0, step=1, limit=4
  $region2: #{conv_block_pallas.1} parent=0 // loop_pre_header
    _
  $region3: #{conv_block_pallas.1} parent=0 // loop_header
    %s9 = sphi 0, %s13
    %p10 = scmp.ge.s32.totalorder %s9, 4
    %s19 = sphi 0, %s21
    %s22 = sphi 0, %s19
    %s23 = sphi 0, %s22
    %s39 = sphi 0, %s23
    %s43 = sphi 0, %s43
    %s45 = sphi 0, %s43
    %s46 = sphi 0, %s45
    %s60 = sphi 0, %s46
    %s64 = sphi 0, %s64
    %s66 = sphi 0, %s64
    %s67 = sphi 0, %s66
    %s81 = sphi 0, %s67
    %s87 = sphi 0, %s89
    %s90 = sphi 0, %s87
    %s91 = sphi 0, %s90
    %s107 = sphi 0, %s91
  $region4: #{conv_block_pallas.1} parent=0 // loop_header_branch
    %12 = sbr.rel (%p10) target = $region8
  $region5: #{conv_block_pallas.1} parent=0 // loop_body
    %s14 = ssub.s32 %s9, 1
    %s15 = ssub.s32 %s9, 2
    %s16 = sadd.s32 %s9, 1
    %s17 = ssub.s32 %s9, %s16
    %p18 = scmp.eq.s32.totalorder %s17, 0
    %s20 = sadd.s32 %s19, 1
    %s21 = scalar_select %p18, %s19, %s20
    %p24 = pneg %p18
    %p25 = scmp.eq.s32.totalorder %s9, 1
    %p26 = por %p24, %p25
    %p27 = scmp.ne.s32.totalorder %s19, %s22
    %p28 = scmp.eq.s32.totalorder %s9, 0
    %p29 = por %p27, %p28
    %p30 = scmp.ne.s32.totalorder %s19, %s22
    %p31 = scmp.eq.s32.totalorder %s14, 1
    %p32 = por %p30, %p31
    %p33 = scmp.ne.s32.totalorder %s22, %s23
    %p34 = scmp.eq.s32.totalorder %s14, 0
    %p35 = por %p33, %p34
    %p36 = scmp.ne.s32.totalorder %s22, %s23
    %p37 = scmp.eq.s32.totalorder %s15, 1
    %p38 = por %p36, %p37
    %p40 = scmp.ne.s32.totalorder %s23, %s39
    %p41 = scmp.eq.s32.totalorder %s15, 0
    %p42 = por %p40, %p41
    %s44 = sadd.s32 %s43, 1
    %p47 = scmp.eq.s32.totalorder %s9, 1
    %p48 = scmp.ne.s32.totalorder %s43, %s45
    %p49 = scmp.eq.s32.totalorder %s9, 0
    %p50 = por %p48, %p49
    %p51 = scmp.ne.s32.totalorder %s43, %s45
    %p52 = scmp.eq.s32.totalorder %s14, 1
    %p53 = por %p51, %p52
    %p54 = scmp.ne.s32.totalorder %s45, %s46
    %p55 = scmp.eq.s32.totalorder %s14, 0
    %p56 = por %p54, %p55
    %p57 = scmp.ne.s32.totalorder %s45, %s46
    %p58 = scmp.eq.s32.totalorder %s15, 1
    %p59 = por %p57, %p58
    %p61 = scmp.ne.s32.totalorder %s46, %s60
    %p62 = scmp.eq.s32.totalorder %s15, 0
    %p63 = por %p61, %p62
    %s65 = sadd.s32 %s64, 1
    %p68 = scmp.eq.s32.totalorder %s9, 1
    %p69 = scmp.ne.s32.totalorder %s64, %s66
    %p70 = scmp.eq.s32.totalorder %s9, 0
    %p71 = por %p69, %p70
    %p72 = scmp.ne.s32.totalorder %s64, %s66
    %p73 = scmp.eq.s32.totalorder %s14, 1
    %p74 = por %p72, %p73
    %p75 = scmp.ne.s32.totalorder %s66, %s67
    %p76 = scmp.eq.s32.totalorder %s14, 0
    %p77 = por %p75, %p76
    %p78 = scmp.ne.s32.totalorder %s66, %s67
    %p79 = scmp.eq.s32.totalorder %s15, 1
    %p80 = por %p78, %p79
    %p82 = scmp.ne.s32.totalorder %s67, %s81
    %p83 = scmp.eq.s32.totalorder %s15, 0
    %p84 = por %p82, %p83
    %s85 = ssub.s32 %s9, %s16
    %p86 = scmp.eq.s32.totalorder %s85, 0
    %s88 = sadd.s32 %s87, 1
    %s89 = scalar_select %p86, %s87, %s88
    %p92 = pneg %p86
    %p93 = scmp.eq.s32.totalorder %s9, 1
    %p94 = por %p92, %p93
    %p95 = scmp.ne.s32.totalorder %s87, %s90
    %p96 = scmp.eq.s32.totalorder %s9, 0
    %p97 = por %p95, %p96
    %p98 = scmp.ne.s32.totalorder %s87, %s90
    %p99 = scmp.eq.s32.totalorder %s14, 1
    %p100 = por %p98, %p99
    %p101 = scmp.ne.s32.totalorder %s90, %s91
    %p102 = scmp.eq.s32.totalorder %s14, 0
    %p103 = por %p101, %p102
    %p104 = scmp.ne.s32.totalorder %s90, %s91
    %p105 = scmp.eq.s32.totalorder %s15, 1
    %p106 = por %p104, %p105
    %p108 = scmp.ne.s32.totalorder %s91, %s107
    %p109 = scmp.eq.s32.totalorder %s15, 0
    %p110 = por %p108, %p109
    %p111 = scmp.le.s32.totalorder 1, %s9
    %p112 = scmp.lt.s32.totalorder %s9, 3
    %p113 = pnand %p111, %p112
    %p114 = pneg %p113
    // Predicated region
    $region9: #{conv_block_pallas.1} parent=5 // pred_check
      _
    $region10: #{conv_block_pallas.1} parent=5 // pred_check_branch
      %116 = sbr.rel (%p113) target = $region12
    $region11: #{conv_block_pallas.1} parent=5 // pred_region
      %s117 = ssub.s32 %s9, 1
      // Predicated region
      $region13: #{conv_block_pallas.1} parent=11 // pred_check
        %p118 = pneg %p56
      $region14: #{conv_block_pallas.1} parent=11 // pred_check_branch
        %120 = sbr.rel (%p118) target = $region16
      $region15: #{conv_block_pallas.1} parent=11 // pred_region
        _
      $region16: #{conv_block_pallas.1} parent=11 // pred_fallthru
        _
      // Predicated region
      $region17: #{conv_block_pallas.1} parent=11 // pred_check
        %p121 = pneg %p77
      $region18: #{conv_block_pallas.1} parent=11 // pred_check_branch
        %123 = sbr.rel (%p121) target = $region20
      $region19: #{conv_block_pallas.1} parent=11 // pred_region
        _
      $region20: #{conv_block_pallas.1} parent=11 // pred_fallthru
        _
    $region12: #{conv_block_pallas.1} parent=5 // pred_fallthru
      _
    %p124 = scmp.lt.s32.totalorder %s9, 2
    // Predicated region
    $region21: #{conv_block_pallas.1} parent=5 // pred_check
      %p125 = pneg %p124
    $region22: #{conv_block_pallas.1} parent=5 // pred_check_branch
      %127 = sbr.rel (%p125) target = $region24
    $region23: #{conv_block_pallas.1} parent=5 // pred_region
      // Predicated region
      $region25: #{conv_block_pallas.1} parent=23 // pred_check
        %p128 = pneg %p29
      $region26: #{conv_block_pallas.1} parent=23 // pred_check_branch
        %130 = sbr.rel (%p128) target = $region28
      $region27: #{conv_block_pallas.1} parent=23 // pred_region
        %p131 = scmp.lt.s32.totalorder %s9, 1
        %s132 = scalar_select %p131, %s9, 1
        %s133 = smul.addr %s132, 54
        %s134 = smul.addr %s133, 4
        %s135 = scalar_lea.vmem %s0, %s134
      $region28: #{conv_block_pallas.1} parent=23 // pred_fallthru
        _
    $region24: #{conv_block_pallas.1} parent=5 // pred_fallthru
      _
    %p136 = scmp.le.s32.totalorder 1, %s9
    %p137 = scmp.lt.s32.totalorder %s9, 3
    %p138 = pnand %p136, %p137
    %p139 = pneg %p138
    // Predicated region
    $region29: #{conv_block_pallas.1} parent=5 // pred_check
      _
    $region30: #{conv_block_pallas.1} parent=5 // pred_check_branch
      %141 = sbr.rel (%p138) target = $region32
    $region31: #{conv_block_pallas.1} parent=5 // pred_region
      %s142 = ssub.s32 %s9, 1
      %p143 = scmp.lt.s32.totalorder %s14, 1
      %s144 = scalar_select %p143, %s14, 1
      %s145 = smul.addr %s144, 54
      %s146 = smul.addr %s145, 4
      %s147 = scalar_lea.vmem %s0, %s146
      %p148 = pneg %p35
      %p149 = pneg %p32
      %p150 = pneg %p56
      %p151 = pneg %p53
      %p152 = pneg %p77
      %p153 = pneg %p74
      %p154 = pneg %p103
      %p155 = pneg %p100
      %p156 = scmp.lt.s32.totalorder %s14, 1
      %s157 = scalar_select %p156, %s14, 1
      %s158 = smul.addr %s157, 32
      %s159 = smul.addr %s158, 4
      %s160 = scalar_lea.vmem %s3, %s159
      %p161 = scmp.lt.s32.totalorder %s14, 1
      %s162 = scalar_select %p161, %s14, 1
      %s163 = smul.addr %s162, 54
      %s164 = smul.addr %s163, 4
      %s165 = scalar_lea.vmem %s0, %s164
      %p166 = scmp.lt.s32.totalorder %s14, 1
      %s167 = scalar_select %p166, %s14, 1
      %s168 = smul.addr %s167, 32
      %s169 = smul.addr %s168, 4
      %s170 = scalar_lea.vmem %s3, %s169
      %v172 = vld [vmem:[%s165] sm:$0xf]
      %v173 = vld [vmem:[%s165 + $0x4] sm:$0xf]
      %v174 = vld [vmem:[%s165 + $0x8] sm:$0x1]
      %v175 = vld [vmem:[%s165 + $0xc] sm:$0xf]
      %v176 = vld [vmem:[%s165 + $0x10] sm:$0xf]
      %v177 = vld [vmem:[%s165 + $0x14] sm:$0x1]
      %v178 = vld [vmem:[%s165 + $0x18] sm:$0xf]
      %v179 = vld [vmem:[%s165 + $0x1c] sm:$0xf]
      %v180 = vld [vmem:[%s165 + $0x20] sm:$0x1]
      %v181 = vld [vmem:[%s165 + $0x24] sm:$0xf]
      %v182 = vld [vmem:[%s165 + $0x28] sm:$0xf]
      %v183 = vld [vmem:[%s165 + $0x2c] sm:$0x1]
      %v184 = vld [vmem:[%s165 + $0x30] sm:$0xf]
      %v185 = vld [vmem:[%s165 + $0x34] sm:$0xf]
      %v186 = vld [vmem:[%s165 + $0x38] sm:$0x1]
      %v187 = vld [vmem:[%s165 + $0x3c] sm:$0xf]
      %v188 = vld [vmem:[%s165 + $0x40] sm:$0xf]
      %v189 = vld [vmem:[%s165 + $0x44] sm:$0x1]
      %v190 = vld [vmem:[%s165 + $0x48] sm:$0xf]
      %v191 = vld [vmem:[%s165 + $0x4c] sm:$0xf]
      %v192 = vld [vmem:[%s165 + $0x50] sm:$0x1]
      %v193 = vld [vmem:[%s165 + $0x54] sm:$0xf]
      %v194 = vld [vmem:[%s165 + $0x58] sm:$0xf]
      %v195 = vld [vmem:[%s165 + $0x5c] sm:$0x1]
      %v196 = vld [vmem:[%s165 + $0x60] sm:$0xf]
      %v197 = vld [vmem:[%s165 + $0x64] sm:$0xf]
      %v198 = vld [vmem:[%s165 + $0x68] sm:$0x1]
      %v199 = vld [vmem:[%s165 + $0x6c] sm:$0xf]
      %v200 = vld [vmem:[%s165 + $0x70] sm:$0xf]
      %v201 = vld [vmem:[%s165 + $0x74] sm:$0x1]
      %v202 = vld [vmem:[%s165 + $0x78] sm:$0xf]
      %v203 = vld [vmem:[%s165 + $0x7c] sm:$0xf]
      %v204 = vld [vmem:[%s165 + $0x80] sm:$0x1]
      %v205 = vld [vmem:[%s165 + $0x84] sm:$0xf]
      %v206 = vld [vmem:[%s165 + $0x88] sm:$0xf]
      %v207 = vld [vmem:[%s165 + $0x8c] sm:$0x1]
      %v208 = vld [vmem:[%s165 + $0x90] sm:$0xf]
      %v209 = vld [vmem:[%s165 + $0x94] sm:$0xf]
      %v210 = vld [vmem:[%s165 + $0x98] sm:$0x1]
      %v211 = vld [vmem:[%s165 + $0x9c] sm:$0xf]
      %v212 = vld [vmem:[%s165 + $0xa0] sm:$0xf]
      %v213 = vld [vmem:[%s165 + $0xa4] sm:$0x1]
      %v214 = vld [vmem:[%s165 + $0xa8] sm:$0xf]
      %v215 = vld [vmem:[%s165 + $0xac] sm:$0xf]
      %v216 = vld [vmem:[%s165 + $0xb0] sm:$0x1]
      %v217 = vld [vmem:[%s165 + $0xb4] sm:$0xf]
      %v218 = vld [vmem:[%s165 + $0xb8] sm:$0xf]
      %v219 = vld [vmem:[%s165 + $0xbc] sm:$0x1]
      %v220 = vld [vmem:[%s165 + $0xc0] sm:$0xf]
      %v221 = vld [vmem:[%s165 + $0xc4] sm:$0xf]
      %v222 = vld [vmem:[%s165 + $0xc8] sm:$0x1]
      %v223 = vld [vmem:[%s165 + $0xcc] sm:$0xf]
      %v224 = vld [vmem:[%s165 + $0xd0] sm:$0xf]
      %v225 = vld [vmem:[%s165 + $0xd4] sm:$0x1]
      %v258 = vunpack.c.l.b16 %v172
      %v259 = vunpack.c.l.b16 %v173
      %v260 = vunpack.c.l.b16 %v175
      %v261 = vunpack.c.l.b16 %v176
      %v262 = vunpack.c.l.b16 %v178
      %v263 = vunpack.c.l.b16 %v179
      %v264 = vunpack.c.l.b16 %v181
      %v265 = vunpack.c.l.b16 %v182
      %v266 = vunpack.c.l.b16 %v184
      %v267 = vunpack.c.l.b16 %v185
      %v268 = vunpack.c.l.b16 %v187
      %v269 = vunpack.c.l.b16 %v188
      %v270 = vunpack.c.l.b16 %v190
      %v271 = vunpack.c.l.b16 %v191
      %v272 = vunpack.c.l.b16 %v193
      %v273 = vunpack.c.l.b16 %v194
      %v274 = vunpack.c.l.b16 %v196
      %v275 = vunpack.c.l.b16 %v197
      %v276 = vunpack.c.l.b16 %v199
      %v277 = vunpack.c.l.b16 %v200
      %v278 = vunpack.c.l.b16 %v202
      %v279 = vunpack.c.l.b16 %v203
      %v280 = vunpack.c.l.b16 %v205
      %v281 = vunpack.c.l.b16 %v206
      %v282 = vunpack.c.l.b16 %v208
      %v283 = vunpack.c.l.b16 %v209
      %v284 = vunpack.c.l.b16 %v211
      %v285 = vunpack.c.l.b16 %v212
      %v286 = vunpack.c.l.b16 %v214
      %v287 = vunpack.c.l.b16 %v215
      %v288 = vunpack.c.l.b16 %v217
      %v289 = vunpack.c.l.b16 %v218
      %v290 = vpack.c.b16 %v259, %v258
      %v291 = vpack.c.b16 %v261, %v260
      %v292 = vpack.c.b16 %v263, %v262
      %v293 = vpack.c.b16 %v265, %v264
      %v294 = vpack.c.b16 %v267, %v266
      %v295 = vpack.c.b16 %v269, %v268
      %v296 = vpack.c.b16 %v271, %v270
      %v297 = vpack.c.b16 %v273, %v272
      %v298 = vpack.c.b16 %v275, %v274
      %v299 = vpack.c.b16 %v277, %v276
      %v300 = vpack.c.b16 %v279, %v278
      %v301 = vpack.c.b16 %v281, %v280
      %v302 = vpack.c.b16 %v283, %v282
      %v303 = vpack.c.b16 %v285, %v284
      %v304 = vpack.c.b16 %v287, %v286
      %v305 = vpack.c.b16 %v289, %v288
      %v322 = vunpack.c.l.b16 %v174
      %v323 = vunpack.c.l.b16 %v177
      %v324 = vunpack.c.l.b16 %v180
      %v325 = vunpack.c.l.b16 %v183
      %v326 = vunpack.c.l.b16 %v186
      %v327 = vunpack.c.l.b16 %v189
      %v328 = vunpack.c.l.b16 %v192
      %v329 = vunpack.c.l.b16 %v195
      %v330 = vunpack.c.l.b16 %v198
      %v331 = vunpack.c.l.b16 %v201
      %v332 = vunpack.c.l.b16 %v204
      %v333 = vunpack.c.l.b16 %v207
      %v334 = vunpack.c.l.b16 %v210
      %v335 = vunpack.c.l.b16 %v213
      %v336 = vunpack.c.l.b16 %v216
      %v337 = vunpack.c.l.b16 %v219
      %v338 = vpack.c.b16 %v322, %v322
      %v339 = vpack.c.b16 %v323, %v323
      %v340 = vpack.c.b16 %v324, %v324
      %v341 = vpack.c.b16 %v325, %v325
      %v342 = vpack.c.b16 %v326, %v326
      %v343 = vpack.c.b16 %v327, %v327
      %v344 = vpack.c.b16 %v328, %v328
      %v345 = vpack.c.b16 %v329, %v329
      %v346 = vpack.c.b16 %v330, %v330
      %v347 = vpack.c.b16 %v331, %v331
      %v348 = vpack.c.b16 %v332, %v332
      %v349 = vpack.c.b16 %v333, %v333
      %v350 = vpack.c.b16 %v334, %v334
      %v351 = vpack.c.b16 %v335, %v335
      %v352 = vpack.c.b16 %v336, %v336
      %v353 = vpack.c.b16 %v337, %v337
      %vm354 = vsmask.f32 7424
      %v356 = vshrl.u32 %v290, 16
      %v358 = vshll.u32 %v290, 16
      %v360 = vrot.slane %v358, 1
      %v361 = vor.u32 %v356, %v360
      %v363 = vshll.u32 %v338, 16
      %v365 = vrot.slane %v363, 1
      %v366 = vsel %vm354, %v361, %v365
      %v368 = vshrl.u32 %v291, 16
      %v370 = vshll.u32 %v291, 16
      %v372 = vrot.slane %v370, 1
      %v373 = vor.u32 %v368, %v372
      %v375 = vshll.u32 %v339, 16
      %v377 = vrot.slane %v375, 1
      %v378 = vsel %vm354, %v373, %v377
      %v380 = vshrl.u32 %v292, 16
      %v382 = vshll.u32 %v292, 16
      %v384 = vrot.slane %v382, 1
      %v385 = vor.u32 %v380, %v384
      %v387 = vshll.u32 %v340, 16
      %v389 = vrot.slane %v387, 1
      %v390 = vsel %vm354, %v385, %v389
      %v392 = vshrl.u32 %v293, 16
      %v394 = vshll.u32 %v293, 16
      %v396 = vrot.slane %v394, 1
      %v397 = vor.u32 %v392, %v396
      %v399 = vshll.u32 %v341, 16
      %v401 = vrot.slane %v399, 1
      %v402 = vsel %vm354, %v397, %v401
      %v404 = vshrl.u32 %v294, 16
      %v406 = vshll.u32 %v294, 16
      %v408 = vrot.slane %v406, 1
      %v409 = vor.u32 %v404, %v408
      %v411 = vshll.u32 %v342, 16
      %v413 = vrot.slane %v411, 1
      %v414 = vsel %vm354, %v409, %v413
      %v416 = vshrl.u32 %v295, 16
      %v418 = vshll.u32 %v295, 16
      %v420 = vrot.slane %v418, 1
      %v421 = vor.u32 %v416, %v420
      %v423 = vshll.u32 %v343, 16
      %v425 = vrot.slane %v423, 1
      %v426 = vsel %vm354, %v421, %v425
      %v428 = vshrl.u32 %v296, 16
      %v430 = vshll.u32 %v296, 16
      %v432 = vrot.slane %v430, 1
      %v433 = vor.u32 %v428, %v432
      %v435 = vshll.u32 %v344, 16
      %v437 = vrot.slane %v435, 1
      %v438 = vsel %vm354, %v433, %v437
      %v440 = vshrl.u32 %v297, 16
      %v442 = vshll.u32 %v297, 16
      %v444 = vrot.slane %v442, 1
      %v445 = vor.u32 %v440, %v444
      %v447 = vshll.u32 %v345, 16
      %v449 = vrot.slane %v447, 1
      %v450 = vsel %vm354, %v445, %v449
      %v452 = vshrl.u32 %v298, 16
      %v454 = vshll.u32 %v298, 16
      %v456 = vrot.slane %v454, 1
      %v457 = vor.u32 %v452, %v456
      %v459 = vshll.u32 %v346, 16
      %v461 = vrot.slane %v459, 1
      %v462 = vsel %vm354, %v457, %v461
      %v464 = vshrl.u32 %v299, 16
      %v466 = vshll.u32 %v299, 16
      %v468 = vrot.slane %v466, 1
      %v469 = vor.u32 %v464, %v468
      %v471 = vshll.u32 %v347, 16
      %v473 = vrot.slane %v471, 1
      %v474 = vsel %vm354, %v469, %v473
      %v476 = vshrl.u32 %v300, 16
      %v478 = vshll.u32 %v300, 16
      %v480 = vrot.slane %v478, 1
      %v481 = vor.u32 %v476, %v480
      %v483 = vshll.u32 %v348, 16
      %v485 = vrot.slane %v483, 1
      %v486 = vsel %vm354, %v481, %v485
      %v488 = vshrl.u32 %v301, 16
      %v490 = vshll.u32 %v301, 16
      %v492 = vrot.slane %v490, 1
      %v493 = vor.u32 %v488, %v492
      %v495 = vshll.u32 %v349, 16
      %v497 = vrot.slane %v495, 1
      %v498 = vsel %vm354, %v493, %v497
      %v500 = vshrl.u32 %v302, 16
      %v502 = vshll.u32 %v302, 16
      %v504 = vrot.slane %v502, 1
      %v505 = vor.u32 %v500, %v504
      %v507 = vshll.u32 %v350, 16
      %v509 = vrot.slane %v507, 1
      %v510 = vsel %vm354, %v505, %v509
      %v512 = vshrl.u32 %v303, 16
      %v514 = vshll.u32 %v303, 16
      %v516 = vrot.slane %v514, 1
      %v517 = vor.u32 %v512, %v516
      %v519 = vshll.u32 %v351, 16
      %v521 = vrot.slane %v519, 1
      %v522 = vsel %vm354, %v517, %v521
      %v524 = vshrl.u32 %v304, 16
      %v526 = vshll.u32 %v304, 16
      %v528 = vrot.slane %v526, 1
      %v529 = vor.u32 %v524, %v528
      %v531 = vshll.u32 %v352, 16
      %v533 = vrot.slane %v531, 1
      %v534 = vsel %vm354, %v529, %v533
      %v536 = vshrl.u32 %v305, 16
      %v538 = vshll.u32 %v305, 16
      %v540 = vrot.slane %v538, 1
      %v541 = vor.u32 %v536, %v540
      %v543 = vshll.u32 %v353, 16
      %v545 = vrot.slane %v543, 1
      %v546 = vsel %vm354, %v541, %v545
      %547 = vrot.lane.b32.xlu0 %v366, 4
      %v548 = vpop.permute.xlu0 %547
      %549 = vrot.lane.b32.xlu0 %v378, 4
      %v550 = vpop.permute.xlu0 %549
      %551 = vrot.lane.b32.xlu0 %v390, 4
      %v552 = vpop.permute.xlu0 %551
      %553 = vrot.lane.b32.xlu0 %v402, 4
      %v554 = vpop.permute.xlu0 %553
      %555 = vrot.lane.b32.xlu0 %v414, 4
      %v556 = vpop.permute.xlu0 %555
      %557 = vrot.lane.b32.xlu0 %v426, 4
      %v558 = vpop.permute.xlu0 %557
      %559 = vrot.lane.b32.xlu0 %v438, 4
      %v560 = vpop.permute.xlu0 %559
      %561 = vrot.lane.b32.xlu0 %v450, 4
      %v562 = vpop.permute.xlu0 %561
      %563 = vrot.lane.b32.xlu0 %v462, 4
      %v564 = vpop.permute.xlu0 %563
      %565 = vrot.lane.b32.xlu0 %v474, 4
      %v566 = vpop.permute.xlu0 %565
      %567 = vrot.lane.b32.xlu0 %v486, 4
      %v568 = vpop.permute.xlu0 %567
      %569 = vrot.lane.b32.xlu0 %v498, 4
      %v570 = vpop.permute.xlu0 %569
      %571 = vrot.lane.b32.xlu0 %v510, 4
      %v572 = vpop.permute.xlu0 %571
      %573 = vrot.lane.b32.xlu0 %v522, 4
      %v574 = vpop.permute.xlu0 %573
      %575 = vrot.lane.b32.xlu0 %v534, 4
      %v576 = vpop.permute.xlu0 %575
      %577 = vrot.lane.b32.xlu0 %v546, 4
      %v578 = vpop.permute.xlu0 %577
      %vm579 = vcmask 1046528
      %v580 = vrot.slane %v290, 1
      %v581 = vrot.slane %v338, 1
      %v582 = vsel %vm579, %v580, %v581
      %v583 = vrot.slane %v291, 1
      %v584 = vrot.slane %v339, 1
      %v585 = vsel %vm579, %v583, %v584
      %v586 = vrot.slane %v292, 1
      %v587 = vrot.slane %v340, 1
      %v588 = vsel %vm579, %v586, %v587
      %v589 = vrot.slane %v293, 1
      %v590 = vrot.slane %v341, 1
      %v591 = vsel %vm579, %v589, %v590
      %v592 = vrot.slane %v294, 1
      %v593 = vrot.slane %v342, 1
      %v594 = vsel %vm579, %v592, %v593
      %v595 = vrot.slane %v295, 1
      %v596 = vrot.slane %v343, 1
      %v597 = vsel %vm579, %v595, %v596
      %v598 = vrot.slane %v296, 1
      %v599 = vrot.slane %v344, 1
      %v600 = vsel %vm579, %v598, %v599
      %v601 = vrot.slane %v297, 1
      %v602 = vrot.slane %v345, 1
      %v603 = vsel %vm579, %v601, %v602
      %v604 = vrot.slane %v298, 1
      %v605 = vrot.slane %v346, 1
      %v606 = vsel %vm579, %v604, %v605
      %v607 = vrot.slane %v299, 1
      %v608 = vrot.slane %v347, 1
      %v609 = vsel %vm579, %v607, %v608
      %v610 = vrot.slane %v300, 1
      %v611 = vrot.slane %v348, 1
      %v612 = vsel %vm579, %v610, %v611
      %v613 = vrot.slane %v301, 1
      %v614 = vrot.slane %v349, 1
      %v615 = vsel %vm579, %v613, %v614
      %v616 = vrot.slane %v302, 1
      %v617 = vrot.slane %v350, 1
      %v618 = vsel %vm579, %v616, %v617
      %v619 = vrot.slane %v303, 1
      %v620 = vrot.slane %v351, 1
      %v621 = vsel %vm579, %v619, %v620
      %v622 = vrot.slane %v304, 1
      %v623 = vrot.slane %v352, 1
      %v624 = vsel %vm579, %v622, %v623
      %v625 = vrot.slane %v305, 1
      %v626 = vrot.slane %v353, 1
      %v627 = vsel %vm579, %v625, %v626
      %628 = vrot.lane.b32.xlu0 %v582, 8
      %v629 = vpop.permute.xlu0 %628
      %630 = vrot.lane.b32.xlu0 %v585, 8
      %v631 = vpop.permute.xlu0 %630
      %632 = vrot.lane.b32.xlu0 %v588, 8
      %v633 = vpop.permute.xlu0 %632
      %634 = vrot.lane.b32.xlu0 %v591, 8
      %v635 = vpop.permute.xlu0 %634
      %636 = vrot.lane.b32.xlu0 %v594, 8
      %v637 = vpop.permute.xlu0 %636
      %638 = vrot.lane.b32.xlu0 %v597, 8
      %v639 = vpop.permute.xlu0 %638
      %640 = vrot.lane.b32.xlu0 %v600, 8
      %v641 = vpop.permute.xlu0 %640
      %642 = vrot.lane.b32.xlu0 %v603, 8
      %v643 = vpop.permute.xlu0 %642
      %644 = vrot.lane.b32.xlu0 %v606, 8
      %v645 = vpop.permute.xlu0 %644
      %646 = vrot.lane.b32.xlu0 %v609, 8
      %v647 = vpop.permute.xlu0 %646
      %648 = vrot.lane.b32.xlu0 %v612, 8
      %v649 = vpop.permute.xlu0 %648
      %650 = vrot.lane.b32.xlu0 %v615, 8
      %v651 = vpop.permute.xlu0 %650
      %652 = vrot.lane.b32.xlu0 %v618, 8
      %v653 = vpop.permute.xlu0 %652
      %654 = vrot.lane.b32.xlu0 %v621, 8
      %v655 = vpop.permute.xlu0 %654
      %656 = vrot.lane.b32.xlu0 %v624, 8
      %v657 = vpop.permute.xlu0 %656
      %658 = vrot.lane.b32.xlu0 %v627, 8
      %v659 = vpop.permute.xlu0 %658
      %v662 = vunpack.c.l.b16 %v220
      %v663 = vunpack.c.l.b16 %v221
      %v664 = vpack.c.b16 %v663, %v662
      %665 = vrot.lane.b32.xlu0 %v291, 12
      %v666 = vpop.permute.xlu0 %665
      %667 = vrot.lane.b32.xlu0 %v292, 12
      %v668 = vpop.permute.xlu0 %667
      %669 = vrot.lane.b32.xlu0 %v293, 12
      %v670 = vpop.permute.xlu0 %669
      %671 = vrot.lane.b32.xlu0 %v294, 12
      %v672 = vpop.permute.xlu0 %671
      %673 = vrot.lane.b32.xlu0 %v295, 12
      %v674 = vpop.permute.xlu0 %673
      %675 = vrot.lane.b32.xlu0 %v296, 12
      %v676 = vpop.permute.xlu0 %675
      %677 = vrot.lane.b32.xlu0 %v297, 12
      %v678 = vpop.permute.xlu0 %677
      %679 = vrot.lane.b32.xlu0 %v298, 12
      %v680 = vpop.permute.xlu0 %679
      %681 = vrot.lane.b32.xlu0 %v299, 12
      %v682 = vpop.permute.xlu0 %681
      %683 = vrot.lane.b32.xlu0 %v300, 12
      %v684 = vpop.permute.xlu0 %683
      %685 = vrot.lane.b32.xlu0 %v301, 12
      %v686 = vpop.permute.xlu0 %685
      %687 = vrot.lane.b32.xlu0 %v302, 12
      %v688 = vpop.permute.xlu0 %687
      %689 = vrot.lane.b32.xlu0 %v303, 12
      %v690 = vpop.permute.xlu0 %689
      %691 = vrot.lane.b32.xlu0 %v304, 12
      %v692 = vpop.permute.xlu0 %691
      %693 = vrot.lane.b32.xlu0 %v305, 12
      %v694 = vpop.permute.xlu0 %693
      %695 = vrot.lane.b32.xlu0 %v664, 12
      %v696 = vpop.permute.xlu0 %695
      %v698 = vunpack.c.l.b16 %v222
      %v699 = vpack.c.b16 %v698, %v698
      %v701 = vshrl.u32 %v664, 16
      %v703 = vshll.u32 %v664, 16
      %v705 = vrot.slane %v703, 1
      %v706 = vor.u32 %v701, %v705
      %v708 = vshll.u32 %v699, 16
      %v710 = vrot.slane %v708, 1
      %v711 = vsel %vm354, %v706, %v710
      %712 = vrot.lane.b32.xlu0 %v378, 16
      %v713 = vpop.permute.xlu0 %712
      %714 = vrot.lane.b32.xlu0 %v390, 16
      %v715 = vpop.permute.xlu0 %714
      %716 = vrot.lane.b32.xlu0 %v402, 16
      %v717 = vpop.permute.xlu0 %716
      %718 = vrot.lane.b32.xlu0 %v414, 16
      %v719 = vpop.permute.xlu0 %718
      %720 = vrot.lane.b32.xlu0 %v426, 16
      %v721 = vpop.permute.xlu0 %720
      %722 = vrot.lane.b32.xlu0 %v438, 16
      %v723 = vpop.permute.xlu0 %722
      %724 = vrot.lane.b32.xlu0 %v450, 16
      %v725 = vpop.permute.xlu0 %724
      %726 = vrot.lane.b32.xlu0 %v462, 16
      %v727 = vpop.permute.xlu0 %726
      %728 = vrot.lane.b32.xlu0 %v474, 16
      %v729 = vpop.permute.xlu0 %728
      %730 = vrot.lane.b32.xlu0 %v486, 16
      %v731 = vpop.permute.xlu0 %730
      %732 = vrot.lane.b32.xlu0 %v498, 16
      %v733 = vpop.permute.xlu0 %732
      %734 = vrot.lane.b32.xlu0 %v510, 16
      %v735 = vpop.permute.xlu0 %734
      %736 = vrot.lane.b32.xlu0 %v522, 16
      %v737 = vpop.permute.xlu0 %736
      %738 = vrot.lane.b32.xlu0 %v534, 16
      %v739 = vpop.permute.xlu0 %738
      %740 = vrot.lane.b32.xlu0 %v546, 16
      %v741 = vpop.permute.xlu0 %740
      %742 = vrot.lane.b32.xlu0 %v711, 16
      %v743 = vpop.permute.xlu0 %742
      %v744 = vrot.slane %v664, 1
      %v745 = vrot.slane %v699, 1
      %v746 = vsel %vm579, %v744, %v745
      %747 = vrot.lane.b32.xlu0 %v585, 20
      %v748 = vpop.permute.xlu0 %747
      %749 = vrot.lane.b32.xlu0 %v588, 20
      %v750 = vpop.permute.xlu0 %749
      %751 = vrot.lane.b32.xlu0 %v591, 20
      %v752 = vpop.permute.xlu0 %751
      %753 = vrot.lane.b32.xlu0 %v594, 20
      %v754 = vpop.permute.xlu0 %753
      %755 = vrot.lane.b32.xlu0 %v597, 20
      %v756 = vpop.permute.xlu0 %755
      %757 = vrot.lane.b32.xlu0 %v600, 20
      %v758 = vpop.permute.xlu0 %757
      %759 = vrot.lane.b32.xlu0 %v603, 20
      %v760 = vpop.permute.xlu0 %759
      %761 = vrot.lane.b32.xlu0 %v606, 20
      %v762 = vpop.permute.xlu0 %761
      %763 = vrot.lane.b32.xlu0 %v609, 20
      %v764 = vpop.permute.xlu0 %763
      %765 = vrot.lane.b32.xlu0 %v612, 20
      %v766 = vpop.permute.xlu0 %765
      %767 = vrot.lane.b32.xlu0 %v615, 20
      %v768 = vpop.permute.xlu0 %767
      %769 = vrot.lane.b32.xlu0 %v618, 20
      %v770 = vpop.permute.xlu0 %769
      %771 = vrot.lane.b32.xlu0 %v621, 20
      %v772 = vpop.permute.xlu0 %771
      %773 = vrot.lane.b32.xlu0 %v624, 20
      %v774 = vpop.permute.xlu0 %773
      %775 = vrot.lane.b32.xlu0 %v627, 20
      %v776 = vpop.permute.xlu0 %775
      %777 = vrot.lane.b32.xlu0 %v746, 20
      %v778 = vpop.permute.xlu0 %777
      %v781 = vunpack.c.l.b16 %v223
      %v782 = vunpack.c.l.b16 %v224
      %v783 = vpack.c.b16 %v782, %v781
      %784 = vrot.lane.b32.xlu0 %v292, 24
      %v785 = vpop.permute.xlu0 %784
      %786 = vrot.lane.b32.xlu0 %v293, 24
      %v787 = vpop.permute.xlu0 %786
      %788 = vrot.lane.b32.xlu0 %v294, 24
      %v789 = vpop.permute.xlu0 %788
      %790 = vrot.lane.b32.xlu0 %v295, 24
      %v791 = vpop.permute.xlu0 %790
      %792 = vrot.lane.b32.xlu0 %v296, 24
      %v793 = vpop.permute.xlu0 %792
      %794 = vrot.lane.b32.xlu0 %v297, 24
      %v795 = vpop.permute.xlu0 %794
      %796 = vrot.lane.b32.xlu0 %v298, 24
      %v797 = vpop.permute.xlu0 %796
      %798 = vrot.lane.b32.xlu0 %v299, 24
      %v799 = vpop.permute.xlu0 %798
      %800 = vrot.lane.b32.xlu0 %v300, 24
      %v801 = vpop.permute.xlu0 %800
      %802 = vrot.lane.b32.xlu0 %v301, 24
      %v803 = vpop.permute.xlu0 %802
      %804 = vrot.lane.b32.xlu0 %v302, 24
      %v805 = vpop.permute.xlu0 %804
      %806 = vrot.lane.b32.xlu0 %v303, 24
      %v807 = vpop.permute.xlu0 %806
      %808 = vrot.lane.b32.xlu0 %v304, 24
      %v809 = vpop.permute.xlu0 %808
      %810 = vrot.lane.b32.xlu0 %v305, 24
      %v811 = vpop.permute.xlu0 %810
      %812 = vrot.lane.b32.xlu0 %v664, 24
      %v813 = vpop.permute.xlu0 %812
      %814 = vrot.lane.b32.xlu0 %v783, 24
      %v815 = vpop.permute.xlu0 %814
      %v817 = vunpack.c.l.b16 %v225
      %v818 = vpack.c.b16 %v817, %v817
      %v820 = vshrl.u32 %v783, 16
      %v822 = vshll.u32 %v783, 16
      %v824 = vrot.slane %v822, 1
      %v825 = vor.u32 %v820, %v824
      %v827 = vshll.u32 %v818, 16
      %v829 = vrot.slane %v827, 1
      %v830 = vsel %vm354, %v825, %v829
      %831 = vrot.lane.b32.xlu0 %v390, 28
      %v832 = vpop.permute.xlu0 %831
      %833 = vrot.lane.b32.xlu0 %v402, 28
      %v834 = vpop.permute.xlu0 %833
      %835 = vrot.lane.b32.xlu0 %v414, 28
      %v836 = vpop.permute.xlu0 %835
      %837 = vrot.lane.b32.xlu0 %v426, 28
      %v838 = vpop.permute.xlu0 %837
      %839 = vrot.lane.b32.xlu0 %v438, 28
      %v840 = vpop.permute.xlu0 %839
      %841 = vrot.lane.b32.xlu0 %v450, 28
      %v842 = vpop.permute.xlu0 %841
      %843 = vrot.lane.b32.xlu0 %v462, 28
      %v844 = vpop.permute.xlu0 %843
      %845 = vrot.lane.b32.xlu0 %v474, 28
      %v846 = vpop.permute.xlu0 %845
      %847 = vrot.lane.b32.xlu0 %v486, 28
      %v848 = vpop.permute.xlu0 %847
      %849 = vrot.lane.b32.xlu0 %v498, 28
      %v850 = vpop.permute.xlu0 %849
      %851 = vrot.lane.b32.xlu0 %v510, 28
      %v852 = vpop.permute.xlu0 %851
      %853 = vrot.lane.b32.xlu0 %v522, 28
      %v854 = vpop.permute.xlu0 %853
      %855 = vrot.lane.b32.xlu0 %v534, 28
      %v856 = vpop.permute.xlu0 %855
      %857 = vrot.lane.b32.xlu0 %v546, 28
      %v858 = vpop.permute.xlu0 %857
      %859 = vrot.lane.b32.xlu0 %v711, 28
      %v860 = vpop.permute.xlu0 %859
      %861 = vrot.lane.b32.xlu0 %v830, 28
      %v862 = vpop.permute.xlu0 %861
      %v863 = vrot.slane %v783, 1
      %v864 = vrot.slane %v818, 1
      %v865 = vsel %vm579, %v863, %v864
      %866 = vrot.lane.b32.xlu0 %v588, 32
      %v867 = vpop.permute.xlu0 %866
      %868 = vrot.lane.b32.xlu0 %v591, 32
      %v869 = vpop.permute.xlu0 %868
      %870 = vrot.lane.b32.xlu0 %v594, 32
      %v871 = vpop.permute.xlu0 %870
      %872 = vrot.lane.b32.xlu0 %v597, 32
      %v873 = vpop.permute.xlu0 %872
      %874 = vrot.lane.b32.xlu0 %v600, 32
      %v875 = vpop.permute.xlu0 %874
      %876 = vrot.lane.b32.xlu0 %v603, 32
      %v877 = vpop.permute.xlu0 %876
      %878 = vrot.lane.b32.xlu0 %v606, 32
      %v879 = vpop.permute.xlu0 %878
      %880 = vrot.lane.b32.xlu0 %v609, 32
      %v881 = vpop.permute.xlu0 %880
      %882 = vrot.lane.b32.xlu0 %v612, 32
      %v883 = vpop.permute.xlu0 %882
      %884 = vrot.lane.b32.xlu0 %v615, 32
      %v885 = vpop.permute.xlu0 %884
      %886 = vrot.lane.b32.xlu0 %v618, 32
      %v887 = vpop.permute.xlu0 %886
      %888 = vrot.lane.b32.xlu0 %v621, 32
      %v889 = vpop.permute.xlu0 %888
      %890 = vrot.lane.b32.xlu0 %v624, 32
      %v891 = vpop.permute.xlu0 %890
      %892 = vrot.lane.b32.xlu0 %v627, 32
      %v893 = vpop.permute.xlu0 %892
      %894 = vrot.lane.b32.xlu0 %v746, 32
      %v895 = vpop.permute.xlu0 %894
      %896 = vrot.lane.b32.xlu0 %v865, 32
      %v897 = vpop.permute.xlu0 %896
      %vm898 = vcmask 31744
      %v900 = vsel %vm898, %v290, %v548
      %v902 = vsel %vm898, %v291, %v550
      %v904 = vsel %vm898, %v292, %v552
      %v906 = vsel %vm898, %v293, %v554
      %v908 = vsel %vm898, %v294, %v556
      %v910 = vsel %vm898, %v295, %v558
      %v912 = vsel %vm898, %v296, %v560
      %v914 = vsel %vm898, %v297, %v562
      %v916 = vsel %vm898, %v298, %v564
      %v918 = vsel %vm898, %v299, %v566
      %v920 = vsel %vm898, %v300, %v568
      %v922 = vsel %vm898, %v301, %v570
      %v924 = vsel %vm898, %v302, %v572
      %v926 = vsel %vm898, %v303, %v574
      %v928 = vsel %vm898, %v304, %v576
      %v930 = vsel %vm898, %v305, %v578
      %vm931 = vcmask 64512
      %v933 = vsel %vm931, %v900, %v629
      %v935 = vsel %vm931, %v902, %v631
      %v937 = vsel %vm931, %v904, %v633
      %v939 = vsel %vm931, %v906, %v635
      %v941 = vsel %vm931, %v908, %v637
      %v943 = vsel %vm931, %v910, %v639
      %v945 = vsel %vm931, %v912, %v641
      %v947 = vsel %vm931, %v914, %v643
      %v949 = vsel %vm931, %v916, %v645
      %v951 = vsel %vm931, %v918, %v647
      %v953 = vsel %vm931, %v920, %v649
      %v955 = vsel %vm931, %v922, %v651
      %v957 = vsel %vm931, %v924, %v653
      %v959 = vsel %vm931, %v926, %v655
      %v961 = vsel %vm931, %v928, %v657
      %v963 = vsel %vm931, %v930, %v659
      %vm964 = vcmask 97280
      %v966 = vsel %vm964, %v933, %v666
      %v968 = vsel %vm964, %v935, %v668
      %v970 = vsel %vm964, %v937, %v670
      %v972 = vsel %vm964, %v939, %v672
      %v974 = vsel %vm964, %v941, %v674
      %v976 = vsel %vm964, %v943, %v676
      %v978 = vsel %vm964, %v945, %v678
      %v980 = vsel %vm964, %v947, %v680
      %v982 = vsel %vm964, %v949, %v682
      %v984 = vsel %vm964, %v951, %v684
      %v986 = vsel %vm964, %v953, %v686
      %v988 = vsel %vm964, %v955, %v688
      %v990 = vsel %vm964, %v957, %v690
      %v992 = vsel %vm964, %v959, %v692
      %v994 = vsel %vm964, %v961, %v694
      %v996 = vsel %vm964, %v963, %v696
      %vm997 = vcmask 130048
      %v999 = vsel %vm997, %v966, %v713
      %v1001 = vsel %vm997, %v968, %v715
      %v1003 = vsel %vm997, %v970, %v717
      %v1005 = vsel %vm997, %v972, %v719
      %v1007 = vsel %vm997, %v974, %v721
      %v1009 = vsel %vm997, %v976, %v723
      %v1011 = vsel %vm997, %v978, %v725
      %v1013 = vsel %vm997, %v980, %v727
      %v1015 = vsel %vm997, %v982, %v729
      %v1017 = vsel %vm997, %v984, %v731
      %v1019 = vsel %vm997, %v986, %v733
      %v1021 = vsel %vm997, %v988, %v735
      %v1023 = vsel %vm997, %v990, %v737
      %v1025 = vsel %vm997, %v992, %v739
      %v1027 = vsel %vm997, %v994, %v741
      %v1029 = vsel %vm997, %v996, %v743
      %vm1030 = vcmask 162816
      %v1032 = vsel %vm1030, %v999, %v748
      %v1034 = vsel %vm1030, %v1001, %v750
      %v1036 = vsel %vm1030, %v1003, %v752
      %v1038 = vsel %vm1030, %v1005, %v754
      %v1040 = vsel %vm1030, %v1007, %v756
      %v1042 = vsel %vm1030, %v1009, %v758
      %v1044 = vsel %vm1030, %v1011, %v760
      %v1046 = vsel %vm1030, %v1013, %v762
      %v1048 = vsel %vm1030, %v1015, %v764
      %v1050 = vsel %vm1030, %v1017, %v766
      %v1052 = vsel %vm1030, %v1019, %v768
      %v1054 = vsel %vm1030, %v1021, %v770
      %v1056 = vsel %vm1030, %v1023, %v772
      %v1058 = vsel %vm1030, %v1025, %v774
      %v1060 = vsel %vm1030, %v1027, %v776
      %v1062 = vsel %vm1030, %v1029, %v778
      %vm1063 = vcmask 195584
      %v1065 = vsel %vm1063, %v1032, %v785
      %v1067 = vsel %vm1063, %v1034, %v787
      %v1069 = vsel %vm1063, %v1036, %v789
      %v1071 = vsel %vm1063, %v1038, %v791
      %v1073 = vsel %vm1063, %v1040, %v793
      %v1075 = vsel %vm1063, %v1042, %v795
      %v1077 = vsel %vm1063, %v1044, %v797
      %v1079 = vsel %vm1063, %v1046, %v799
      %v1081 = vsel %vm1063, %v1048, %v801
      %v1083 = vsel %vm1063, %v1050, %v803
      %v1085 = vsel %vm1063, %v1052, %v805
      %v1087 = vsel %vm1063, %v1054, %v807
      %v1089 = vsel %vm1063, %v1056, %v809
      %v1091 = vsel %vm1063, %v1058, %v811
      %v1093 = vsel %vm1063, %v1060, %v813
      %v1095 = vsel %vm1063, %v1062, %v815
      %vm1096 = vcmask 228352
      %v1098 = vsel %vm1096, %v1065, %v832
      %v1100 = vsel %vm1096, %v1067, %v834
      %v1102 = vsel %vm1096, %v1069, %v836
      %v1104 = vsel %vm1096, %v1071, %v838
      %v1106 = vsel %vm1096, %v1073, %v840
      %v1108 = vsel %vm1096, %v1075, %v842
      %v1110 = vsel %vm1096, %v1077, %v844
      %v1112 = vsel %vm1096, %v1079, %v846
      %v1114 = vsel %vm1096, %v1081, %v848
      %v1116 = vsel %vm1096, %v1083, %v850
      %v1118 = vsel %vm1096, %v1085, %v852
      %v1120 = vsel %vm1096, %v1087, %v854
      %v1122 = vsel %vm1096, %v1089, %v856
      %v1124 = vsel %vm1096, %v1091, %v858
      %v1126 = vsel %vm1096, %v1093, %v860
      %v1128 = vsel %vm1096, %v1095, %v862
      %vm1129 = vcmask 261120
      %v1131 = vsel %vm1129, %v1098, %v867
      %v1133 = vsel %vm1129, %v1100, %v869
      %v1135 = vsel %vm1129, %v1102, %v871
      %v1137 = vsel %vm1129, %v1104, %v873
      %v1139 = vsel %vm1129, %v1106, %v875
      %v1141 = vsel %vm1129, %v1108, %v877
      %v1143 = vsel %vm1129, %v1110, %v879
      %v1145 = vsel %vm1129, %v1112, %v881
      %v1147 = vsel %vm1129, %v1114, %v883
      %v1149 = vsel %vm1129, %v1116, %v885
      %v1151 = vsel %vm1129, %v1118, %v887
      %v1153 = vsel %vm1129, %v1120, %v889
      %v1155 = vsel %vm1129, %v1122, %v891
      %v1157 = vsel %vm1129, %v1124, %v893
      %v1159 = vsel %vm1129, %v1126, %v895
      %v1161 = vsel %vm1129, %v1128, %v897
      %v1162 = vld [vmem:[%s1] sm:$0xf]
      %v1163 = vld [vmem:[%s1 + $0x4] sm:$0xf]
      %v1164 = vld [vmem:[%s1 + $0x8] sm:$0xf]
      %v1165 = vld [vmem:[%s1 + $0xc] sm:$0xf]
      %v1166 = vld [vmem:[%s1 + $0x10] sm:$0x3]
      %v1172 = vunpack.c.l.b16 %v1162
      %v1173 = vunpack.c.l.b16 %v1163
      %v1174 = vunpack.c.l.b16 %v1164
      %v1175 = vunpack.c.l.b16 %v1165
      %v1176 = vunpack.c.l.b16 %v1166
      %v1177 = vpack.c.b16 %v1173, %v1172
      %v1178 = vpack.c.b16 %v1175, %v1174
      %v1179 = vpack.c.b16 %v1176, %v1176
      %vm1182 = vcmask 293888
      %v1183 = vsel %vm1182, %v1131, 0
      %v1185 = vsel %vm1182, %v1133, 0
      %v1187 = vsel %vm1182, %v1135, 0
      %v1189 = vsel %vm1182, %v1137, 0
      %v1191 = vsel %vm1182, %v1139, 0
      %v1193 = vsel %vm1182, %v1141, 0
      %v1195 = vsel %vm1182, %v1143, 0
      %v1197 = vsel %vm1182, %v1145, 0
      %v1199 = vsel %vm1182, %v1147, 0
      %v1201 = vsel %vm1182, %v1149, 0
      %v1203 = vsel %vm1182, %v1151, 0
      %v1205 = vsel %vm1182, %v1153, 0
      %v1207 = vsel %vm1182, %v1155, 0
      %v1209 = vsel %vm1182, %v1157, 0
      %v1211 = vsel %vm1182, %v1159, 0
      %v1213 = vsel %vm1182, %v1161, 0
      %vm1215 = vcmask 1041408
      %v1217 = vsel %vm1215, %v1179, 0
      %1219 = vmatpush.bf16.msra.mxu0 0
      %1220 = vmatpush.bf16.msra.mxu0 0
      %1221 = vmatpush.bf16.msra.mxu0 0
      %1222 = vmatpush.bf16.msra.mxu0 0
      %1223 = vmatpush.bf16.msra.mxu0 0
      %1224 = vmatpush.bf16.msra.mxu0 %v1217
      %1225 = vmatpush.bf16.msra.mxu0 %v1178
      %1226 = vmatpush.bf16.msra.mxu0 %v1177
      %1227 = vmatmul.bf16.gmra.mxu0 %v1183
      %v1228 = vpop.f32.mrf.mxu0
      %v1229 = vadd.f32 0.0, %v1228
      %v1230 = vpop.f32.mrf.mxu0
      %v1231 = vadd.f32 0.0, %v1230
      %1232 = vmatmul.bf16.gmra.mxu0 %v1185
      %v1233 = vpop.f32.mrf.mxu0
      %v1234 = vadd.f32 0.0, %v1233
      %v1235 = vpop.f32.mrf.mxu0
      %v1236 = vadd.f32 0.0, %v1235
      %1237 = vmatmul.bf16.gmra.mxu0 %v1187
      %v1238 = vpop.f32.mrf.mxu0
      %v1239 = vadd.f32 0.0, %v1238
      %v1240 = vpop.f32.mrf.mxu0
      %v1241 = vadd.f32 0.0, %v1240
      %1242 = vmatmul.bf16.gmra.mxu0 %v1189
      %v1243 = vpop.f32.mrf.mxu0
      %v1244 = vadd.f32 0.0, %v1243
      %v1245 = vpop.f32.mrf.mxu0
      %v1246 = vadd.f32 0.0, %v1245
      %1247 = vmatmul.bf16.gmra.mxu0 %v1191
      %v1248 = vpop.f32.mrf.mxu0
      %v1249 = vadd.f32 0.0, %v1248
      %v1250 = vpop.f32.mrf.mxu0
      %v1251 = vadd.f32 0.0, %v1250
      %1252 = vmatmul.bf16.gmra.mxu0 %v1193
      %v1253 = vpop.f32.mrf.mxu0
      %v1254 = vadd.f32 0.0, %v1253
      %v1255 = vpop.f32.mrf.mxu0
      %v1256 = vadd.f32 0.0, %v1255
      %1257 = vmatmul.bf16.gmra.mxu0 %v1195
      %v1258 = vpop.f32.mrf.mxu0
      %v1259 = vadd.f32 0.0, %v1258
      %v1260 = vpop.f32.mrf.mxu0
      %v1261 = vadd.f32 0.0, %v1260
      %1262 = vmatmul.bf16.gmra.mxu0 %v1197
      %v1263 = vpop.f32.mrf.mxu0
      %v1264 = vadd.f32 0.0, %v1263
      %v1265 = vpop.f32.mrf.mxu0
      %v1266 = vadd.f32 0.0, %v1265
      %1267 = vmatmul.bf16.gmra.mxu0 %v1199
      %v1268 = vpop.f32.mrf.mxu0
      %v1269 = vadd.f32 0.0, %v1268
      %v1270 = vpop.f32.mrf.mxu0
      %v1271 = vadd.f32 0.0, %v1270
      %1272 = vmatmul.bf16.gmra.mxu0 %v1201
      %v1273 = vpop.f32.mrf.mxu0
      %v1274 = vadd.f32 0.0, %v1273
      %v1275 = vpop.f32.mrf.mxu0
      %v1276 = vadd.f32 0.0, %v1275
      %1277 = vmatmul.bf16.gmra.mxu0 %v1203
      %v1278 = vpop.f32.mrf.mxu0
      %v1279 = vadd.f32 0.0, %v1278
      %v1280 = vpop.f32.mrf.mxu0
      %v1281 = vadd.f32 0.0, %v1280
      %1282 = vmatmul.bf16.gmra.mxu0 %v1205
      %v1283 = vpop.f32.mrf.mxu0
      %v1284 = vadd.f32 0.0, %v1283
      %v1285 = vpop.f32.mrf.mxu0
      %v1286 = vadd.f32 0.0, %v1285
      %1287 = vmatmul.bf16.gmra.mxu0 %v1207
      %v1288 = vpop.f32.mrf.mxu0
      %v1289 = vadd.f32 0.0, %v1288
      %v1290 = vpop.f32.mrf.mxu0
      %v1291 = vadd.f32 0.0, %v1290
      %1292 = vmatmul.bf16.gmra.mxu0 %v1209
      %v1293 = vpop.f32.mrf.mxu0
      %v1294 = vadd.f32 0.0, %v1293
      %v1295 = vpop.f32.mrf.mxu0
      %v1296 = vadd.f32 0.0, %v1295
      %1297 = vmatmul.bf16.gmra.mxu0 %v1211
      %v1298 = vpop.f32.mrf.mxu0
      %v1299 = vadd.f32 0.0, %v1298
      %v1300 = vpop.f32.mrf.mxu0
      %v1301 = vadd.f32 0.0, %v1300
      %1302 = vmatmul.bf16.gmra.mxu0 %v1213
      %v1303 = vpop.f32.mrf.mxu0
      %v1304 = vadd.f32 0.0, %v1303
      %v1305 = vpop.f32.mrf.mxu0
      %v1306 = vadd.f32 0.0, %v1305
      %1307 = vdwg.mxu0
      %v1308 = vadd.f32 %v1229, %v1231
      %v1309 = vadd.f32 %v1308, %v1234
      %v1310 = vadd.f32 %v1309, %v1236
      %v1311 = vadd.f32 %v1310, %v1239
      %v1312 = vadd.f32 %v1311, %v1241
      %v1313 = vadd.f32 %v1312, %v1244
      %v1314 = vadd.f32 %v1313, %v1246
      %v1315 = vadd.f32 %v1314, %v1249
      %v1316 = vadd.f32 %v1315, %v1251
      %v1317 = vadd.f32 %v1316, %v1254
      %v1318 = vadd.f32 %v1317, %v1256
      %v1319 = vadd.f32 %v1318, %v1259
      %v1320 = vadd.f32 %v1319, %v1261
      %v1321 = vadd.f32 %v1320, %v1264
      %v1322 = vadd.f32 %v1321, %v1266
      %v1323 = vadd.f32 %v1322, %v1269
      %v1324 = vadd.f32 %v1323, %v1271
      %v1325 = vadd.f32 %v1324, %v1274
      %v1326 = vadd.f32 %v1325, %v1276
      %v1327 = vadd.f32 %v1326, %v1279
      %v1328 = vadd.f32 %v1327, %v1281
      %v1329 = vadd.f32 %v1328, %v1284
      %v1330 = vadd.f32 %v1329, %v1286
      %v1331 = vadd.f32 %v1330, %v1289
      %v1332 = vadd.f32 %v1331, %v1291
      %v1333 = vadd.f32 %v1332, %v1294
      %v1334 = vadd.f32 %v1333, %v1296
      %v1335 = vadd.f32 %v1334, %v1299
      %v1336 = vadd.f32 %v1335, %v1301
      %v1337 = vadd.f32 %v1336, %v1304
      %v1338 = vadd.f32 %v1337, %v1306
      %v1339 = vrot.slane %v1338, 4
      %v1340 = vadd.f32 %v1338, %v1339
      %v1341 = vrot.slane %v1340, 2
      %v1342 = vadd.f32 %v1340, %v1341
      %v1343 = vrot.slane %v1342, 1
      %v1344 = vadd.f32 %v1342, %v1343
      %v1345 = vmul.f32 %v1344, 0.00390625
      %v1346 = vmul.f32 %v1229, %v1229
      %v1347 = vmul.f32 %v1231, %v1231
      %v1348 = vmul.f32 %v1234, %v1234
      %v1349 = vmul.f32 %v1236, %v1236
      %v1350 = vmul.f32 %v1239, %v1239
      %v1351 = vmul.f32 %v1241, %v1241
      %v1352 = vmul.f32 %v1244, %v1244
      %v1353 = vmul.f32 %v1246, %v1246
      %v1354 = vmul.f32 %v1249, %v1249
      %v1355 = vmul.f32 %v1251, %v1251
      %v1356 = vmul.f32 %v1254, %v1254
      %v1357 = vmul.f32 %v1256, %v1256
      %v1358 = vmul.f32 %v1259, %v1259
      %v1359 = vmul.f32 %v1261, %v1261
      %v1360 = vmul.f32 %v1264, %v1264
      %v1361 = vmul.f32 %v1266, %v1266
      %v1362 = vmul.f32 %v1269, %v1269
      %v1363 = vmul.f32 %v1271, %v1271
      %v1364 = vmul.f32 %v1274, %v1274
      %v1365 = vmul.f32 %v1276, %v1276
      %v1366 = vmul.f32 %v1279, %v1279
      %v1367 = vmul.f32 %v1281, %v1281
      %v1368 = vmul.f32 %v1284, %v1284
      %v1369 = vmul.f32 %v1286, %v1286
      %v1370 = vmul.f32 %v1289, %v1289
      %v1371 = vmul.f32 %v1291, %v1291
      %v1372 = vmul.f32 %v1294, %v1294
      %v1373 = vmul.f32 %v1296, %v1296
      %v1374 = vmul.f32 %v1299, %v1299
      %v1375 = vmul.f32 %v1301, %v1301
      %v1376 = vmul.f32 %v1304, %v1304
      %v1377 = vmul.f32 %v1306, %v1306
      %v1378 = vadd.f32 %v1346, %v1347
      %v1379 = vadd.f32 %v1378, %v1348
      %v1380 = vadd.f32 %v1379, %v1349
      %v1381 = vadd.f32 %v1380, %v1350
      %v1382 = vadd.f32 %v1381, %v1351
      %v1383 = vadd.f32 %v1382, %v1352
      %v1384 = vadd.f32 %v1383, %v1353
      %v1385 = vadd.f32 %v1384, %v1354
      %v1386 = vadd.f32 %v1385, %v1355
      %v1387 = vadd.f32 %v1386, %v1356
      %v1388 = vadd.f32 %v1387, %v1357
      %v1389 = vadd.f32 %v1388, %v1358
      %v1390 = vadd.f32 %v1389, %v1359
      %v1391 = vadd.f32 %v1390, %v1360
      %v1392 = vadd.f32 %v1391, %v1361
      %v1393 = vadd.f32 %v1392, %v1362
      %v1394 = vadd.f32 %v1393, %v1363
      %v1395 = vadd.f32 %v1394, %v1364
      %v1396 = vadd.f32 %v1395, %v1365
      %v1397 = vadd.f32 %v1396, %v1366
      %v1398 = vadd.f32 %v1397, %v1367
      %v1399 = vadd.f32 %v1398, %v1368
      %v1400 = vadd.f32 %v1399, %v1369
      %v1401 = vadd.f32 %v1400, %v1370
      %v1402 = vadd.f32 %v1401, %v1371
      %v1403 = vadd.f32 %v1402, %v1372
      %v1404 = vadd.f32 %v1403, %v1373
      %v1405 = vadd.f32 %v1404, %v1374
      %v1406 = vadd.f32 %v1405, %v1375
      %v1407 = vadd.f32 %v1406, %v1376
      %v1408 = vadd.f32 %v1407, %v1377
      %v1409 = vrot.slane %v1408, 4
      %v1410 = vadd.f32 %v1408, %v1409
      %v1411 = vrot.slane %v1410, 2
      %v1412 = vadd.f32 %v1410, %v1411
      %v1413 = vrot.slane %v1412, 1
      %v1414 = vadd.f32 %v1412, %v1413
      %v1415 = vmul.f32 %v1414, 0.00390625
      %v1416 = vmul.f32 %v1345, %v1345
      %v1417 = vsub.f32 %v1415, %v1416
      %v1418 = vmax.f32 %v1417, 0.0
      %v1419 = vsub.f32 %v1229, %v1345
      %v1420 = vsub.f32 %v1231, %v1345
      %v1421 = vsub.f32 %v1234, %v1345
      %v1422 = vsub.f32 %v1236, %v1345
      %v1423 = vsub.f32 %v1239, %v1345
      %v1424 = vsub.f32 %v1241, %v1345
      %v1425 = vsub.f32 %v1244, %v1345
      %v1426 = vsub.f32 %v1246, %v1345
      %v1427 = vsub.f32 %v1249, %v1345
      %v1428 = vsub.f32 %v1251, %v1345
      %v1429 = vsub.f32 %v1254, %v1345
      %v1430 = vsub.f32 %v1256, %v1345
      %v1431 = vsub.f32 %v1259, %v1345
      %v1432 = vsub.f32 %v1261, %v1345
      %v1433 = vsub.f32 %v1264, %v1345
      %v1434 = vsub.f32 %v1266, %v1345
      %v1435 = vsub.f32 %v1269, %v1345
      %v1436 = vsub.f32 %v1271, %v1345
      %v1437 = vsub.f32 %v1274, %v1345
      %v1438 = vsub.f32 %v1276, %v1345
      %v1439 = vsub.f32 %v1279, %v1345
      %v1440 = vsub.f32 %v1281, %v1345
      %v1441 = vsub.f32 %v1284, %v1345
      %v1442 = vsub.f32 %v1286, %v1345
      %v1443 = vsub.f32 %v1289, %v1345
      %v1444 = vsub.f32 %v1291, %v1345
      %v1445 = vsub.f32 %v1294, %v1345
      %v1446 = vsub.f32 %v1296, %v1345
      %v1447 = vsub.f32 %v1299, %v1345
      %v1448 = vsub.f32 %v1301, %v1345
      %v1449 = vsub.f32 %v1304, %v1345
      %v1450 = vsub.f32 %v1306, %v1345
      %v1451 = vadd.f32 %v1418, 1e-05
      %v1452 = vrsqrt.pop %v1451
      %v1453 = vmul.f32 %v1452, %v1451
      %v1454 = vmul.f32 %v1453, %v1452
      %v1455 = vmul.f32 0.5, %v1454
      %v1456 = vsub.f32 1.5, %v1455
      %v1457 = vmul.f32 %v1452, %v1456
      %vm1458 = vweird.f32 %v1451
      %vm1459 = vweird.f32 %v1452
      %vm1460 = vmor %vm1458, %vm1459
      %v1461 = vsel %vm1460, %v1452, %v1457
      %v1462 = vmul.f32 %v1419, %v1461
      %v1463 = vmul.f32 %v1420, %v1461
      %v1464 = vmul.f32 %v1421, %v1461
      %v1465 = vmul.f32 %v1422, %v1461
      %v1466 = vmul.f32 %v1423, %v1461
      %v1467 = vmul.f32 %v1424, %v1461
      %v1468 = vmul.f32 %v1425, %v1461
      %v1469 = vmul.f32 %v1426, %v1461
      %v1470 = vmul.f32 %v1427, %v1461
      %v1471 = vmul.f32 %v1428, %v1461
      %v1472 = vmul.f32 %v1429, %v1461
      %v1473 = vmul.f32 %v1430, %v1461
      %v1474 = vmul.f32 %v1431, %v1461
      %v1475 = vmul.f32 %v1432, %v1461
      %v1476 = vmul.f32 %v1433, %v1461
      %v1477 = vmul.f32 %v1434, %v1461
      %v1478 = vmul.f32 %v1435, %v1461
      %v1479 = vmul.f32 %v1436, %v1461
      %v1480 = vmul.f32 %v1437, %v1461
      %v1481 = vmul.f32 %v1438, %v1461
      %v1482 = vmul.f32 %v1439, %v1461
      %v1483 = vmul.f32 %v1440, %v1461
      %v1484 = vmul.f32 %v1441, %v1461
      %v1485 = vmul.f32 %v1442, %v1461
      %v1486 = vmul.f32 %v1443, %v1461
      %v1487 = vmul.f32 %v1444, %v1461
      %v1488 = vmul.f32 %v1445, %v1461
      %v1489 = vmul.f32 %v1446, %v1461
      %v1490 = vmul.f32 %v1447, %v1461
      %v1491 = vmul.f32 %v1448, %v1461
      %v1492 = vmul.f32 %v1449, %v1461
      %v1493 = vmul.f32 %v1450, %v1461
      %v1494 = vmax.f32 %v1462, 0.0
      %v1495 = vmax.f32 %v1463, 0.0
      %v1496 = vmax.f32 %v1464, 0.0
      %v1497 = vmax.f32 %v1465, 0.0
      %v1498 = vmax.f32 %v1466, 0.0
      %v1499 = vmax.f32 %v1467, 0.0
      %v1500 = vmax.f32 %v1468, 0.0
      %v1501 = vmax.f32 %v1469, 0.0
      %v1502 = vmax.f32 %v1470, 0.0
      %v1503 = vmax.f32 %v1471, 0.0
      %v1504 = vmax.f32 %v1472, 0.0
      %v1505 = vmax.f32 %v1473, 0.0
      %v1506 = vmax.f32 %v1474, 0.0
      %v1507 = vmax.f32 %v1475, 0.0
      %v1508 = vmax.f32 %v1476, 0.0
      %v1509 = vmax.f32 %v1477, 0.0
      %v1510 = vmax.f32 %v1478, 0.0
      %v1511 = vmax.f32 %v1479, 0.0
      %v1512 = vmax.f32 %v1480, 0.0
      %v1513 = vmax.f32 %v1481, 0.0
      %v1514 = vmax.f32 %v1482, 0.0
      %v1515 = vmax.f32 %v1483, 0.0
      %v1516 = vmax.f32 %v1484, 0.0
      %v1517 = vmax.f32 %v1485, 0.0
      %v1518 = vmax.f32 %v1486, 0.0
      %v1519 = vmax.f32 %v1487, 0.0
      %v1520 = vmax.f32 %v1488, 0.0
      %v1521 = vmax.f32 %v1489, 0.0
      %v1522 = vmax.f32 %v1490, 0.0
      %v1523 = vmax.f32 %v1491, 0.0
      %v1524 = vmax.f32 %v1492, 0.0
      %v1525 = vmax.f32 %v1493, 0.0
      %v1526 = vpack.c.bf16 %v1494, %v1494
      %v1527 = vpack.c.bf16 %v1495, %v1495
      %v1528 = vpack.c.bf16 %v1496, %v1496
      %v1529 = vpack.c.bf16 %v1497, %v1497
      %v1530 = vpack.c.bf16 %v1498, %v1498
      %v1531 = vpack.c.bf16 %v1499, %v1499
      %v1532 = vpack.c.bf16 %v1500, %v1500
      %v1533 = vpack.c.bf16 %v1501, %v1501
      %v1534 = vpack.c.bf16 %v1502, %v1502
      %v1535 = vpack.c.bf16 %v1503, %v1503
      %v1536 = vpack.c.bf16 %v1504, %v1504
      %v1537 = vpack.c.bf16 %v1505, %v1505
      %v1538 = vpack.c.bf16 %v1506, %v1506
      %v1539 = vpack.c.bf16 %v1507, %v1507
      %v1540 = vpack.c.bf16 %v1508, %v1508
      %v1541 = vpack.c.bf16 %v1509, %v1509
      %v1542 = vpack.c.bf16 %v1510, %v1510
      %v1543 = vpack.c.bf16 %v1511, %v1511
      %v1544 = vpack.c.bf16 %v1512, %v1512
      %v1545 = vpack.c.bf16 %v1513, %v1513
      %v1546 = vpack.c.bf16 %v1514, %v1514
      %v1547 = vpack.c.bf16 %v1515, %v1515
      %v1548 = vpack.c.bf16 %v1516, %v1516
      %v1549 = vpack.c.bf16 %v1517, %v1517
      %v1550 = vpack.c.bf16 %v1518, %v1518
      %v1551 = vpack.c.bf16 %v1519, %v1519
      %v1552 = vpack.c.bf16 %v1520, %v1520
      %v1553 = vpack.c.bf16 %v1521, %v1521
      %v1554 = vpack.c.bf16 %v1522, %v1522
      %v1555 = vpack.c.bf16 %v1523, %v1523
      %v1556 = vpack.c.bf16 %v1524, %v1524
      %v1557 = vpack.c.bf16 %v1525, %v1525
      %1558 = vst [vmem:[%s170] sm:$0xf] %v1526
      %1559 = vst [vmem:[%s170 + $0x4] sm:$0xf] %v1527
      %1560 = vst [vmem:[%s170 + $0x8] sm:$0xf] %v1528
      %1561 = vst [vmem:[%s170 + $0xc] sm:$0xf] %v1529
      %1562 = vst [vmem:[%s170 + $0x10] sm:$0xf] %v1530
      %1563 = vst [vmem:[%s170 + $0x14] sm:$0xf] %v1531
      %1564 = vst [vmem:[%s170 + $0x18] sm:$0xf] %v1532
      %1565 = vst [vmem:[%s170 + $0x1c] sm:$0xf] %v1533
      %1566 = vst [vmem:[%s170 + $0x20] sm:$0xf] %v1534
      %1567 = vst [vmem:[%s170 + $0x24] sm:$0xf] %v1535
      %1568 = vst [vmem:[%s170 + $0x28] sm:$0xf] %v1536
      %1569 = vst [vmem:[%s170 + $0x2c] sm:$0xf] %v1537
      %1570 = vst [vmem:[%s170 + $0x30] sm:$0xf] %v1538
      %1571 = vst [vmem:[%s170 + $0x34] sm:$0xf] %v1539
      %1572 = vst [vmem:[%s170 + $0x38] sm:$0xf] %v1540
      %1573 = vst [vmem:[%s170 + $0x3c] sm:$0xf] %v1541
      %1574 = vst [vmem:[%s170 + $0x40] sm:$0xf] %v1542
      %1575 = vst [vmem:[%s170 + $0x44] sm:$0xf] %v1543
      %1576 = vst [vmem:[%s170 + $0x48] sm:$0xf] %v1544
      %1577 = vst [vmem:[%s170 + $0x4c] sm:$0xf] %v1545
      %1578 = vst [vmem:[%s170 + $0x50] sm:$0xf] %v1546
      %1579 = vst [vmem:[%s170 + $0x54] sm:$0xf] %v1547
      %1580 = vst [vmem:[%s170 + $0x58] sm:$0xf] %v1548
      %1581 = vst [vmem:[%s170 + $0x5c] sm:$0xf] %v1549
      %1582 = vst [vmem:[%s170 + $0x60] sm:$0xf] %v1550
      %1583 = vst [vmem:[%s170 + $0x64] sm:$0xf] %v1551
      %1584 = vst [vmem:[%s170 + $0x68] sm:$0xf] %v1552
      %1585 = vst [vmem:[%s170 + $0x6c] sm:$0xf] %v1553
      %1586 = vst [vmem:[%s170 + $0x70] sm:$0xf] %v1554
      %1587 = vst [vmem:[%s170 + $0x74] sm:$0xf] %v1555
      %1588 = vst [vmem:[%s170 + $0x78] sm:$0xf] %v1556
      %1589 = vst [vmem:[%s170 + $0x7c] sm:$0xf] %v1557
      %p1590 = scmp.lt.s32.totalorder %s14, 1
      %s1591 = scalar_select %p1590, %s14, 1
      %s1592 = smul.addr %s1591, 32
      %s1593 = smul.addr %s1592, 4
      %s1594 = scalar_lea.vmem %s3, %s1593
      // Predicated region
      $region33: #{conv_block_pallas.1} parent=31 // pred_check
        %p1595 = pneg %p100
      $region34: #{conv_block_pallas.1} parent=31 // pred_check_branch
        %1597 = sbr.rel (%p1595) target = $region36
      $region35: #{conv_block_pallas.1} parent=31 // pred_region
        _
      $region36: #{conv_block_pallas.1} parent=31 // pred_fallthru
        _
    $region32: #{conv_block_pallas.1} parent=5 // pred_fallthru
      _
    %p1598 = scmp.le.s32.totalorder 2, %s9
    // Predicated region
    $region37: #{conv_block_pallas.1} parent=5 // pred_check
      %p1599 = pneg %p1598
    $region38: #{conv_block_pallas.1} parent=5 // pred_check_branch
      %1601 = sbr.rel (%p1599) target = $region40
    $region39: #{conv_block_pallas.1} parent=5 // pred_region
      %s1602 = ssub.s32 %s9, 2
      // Predicated region
      $region41: #{conv_block_pallas.1} parent=39 // pred_check
        %p1603 = pneg %p106
      $region42: #{conv_block_pallas.1} parent=39 // pred_check_branch
        %1605 = sbr.rel (%p1603) target = $region44
      $region43: #{conv_block_pallas.1} parent=39 // pred_region
        %p1606 = scmp.lt.s32.totalorder %s15, 1
        %s1607 = scalar_select %p1606, %s15, 1
        %s1608 = smul.addr %s1607, 32
        %s1609 = smul.addr %s1608, 4
        %s1610 = scalar_lea.vmem %s3, %s1609
      $region44: #{conv_block_pallas.1} parent=39 // pred_fallthru
        _
    $region40: #{conv_block_pallas.1} parent=5 // pred_fallthru
      _
  $region6: #{conv_block_pallas.1} parent=0 // loop_footer
    %s13 = sadd.s32 1, %s9
  $region7: #{conv_block_pallas.1} parent=0 // loop_footer_branch
    %8 = sbr.rel target = $region3
  $region8: #{conv_block_pallas.1} parent=0 // loop_exit
    _

</llo_original>
